<compile_context>
chip_gen: v6e
topology: v6e:2x2x1
jax: 0.10.0
libtpu: 0.0.40
codegen_flags: <defaults>
</compile_context>

<pallas_src>
import functools

import jax
import jax.numpy as jnp
from jax.experimental import pallas as pl
from jax.experimental.pallas import tpu as pltpu


def _round_up(x, m):
    return (x + m - 1) // m * m


def _bspec(shape, index_map, single_buffer=False):
    """BlockSpec helper: single-buffer grid-invariant operands when supported."""
    if single_buffer:
        try:
            return pl.BlockSpec(shape, index_map, pipeline_mode=pl.Buffered(1))
        except Exception:  # older API without pipeline_mode / Buffered
            pass
    return pl.BlockSpec(shape, index_map)


def _layer_norm_affine(out, g, beta, eps, out_dtype):
    """LayerNorm over last dim via sum / sum-of-squares (independent XLU reductions)."""
    inv_d = 1.0 / out.shape[-1]
    s = jnp.sum(out, axis=-1, keepdims=True)
    s2 = jnp.sum(out * out, axis=-1, keepdims=True)
    mean = s * inv_d
    var = jnp.maximum(s2 * inv_d - mean * mean, 0.0)  # guard tiny cancellation
    y = (out - mean) * jax.lax.rsqrt(var + eps)
    return (y * g + beta).astype(out_dtype)


# ---------------------------------------------------------------------------
# Kernel A: weight resident as a single tile (nk == 1).  No accumulator
# scratch -- the matmul result is a value feeding the LN epilogue directly.
# ---------------------------------------------------------------------------
def _pnr_kernel_fused(x_ref, w_ref, b_ref, g_ref, beta_ref, o_ref, *,
                      scale_residual, eps):
    x = x_ref[...]                                   # (tm, D)
    acc = jnp.dot(x.astype(jnp.bfloat16), w_ref[...],
                  preferred_element_type=jnp.float32)
    out = acc + b_ref[...] + x.astype(jnp.float32) * scale_residual
    o_ref[...] = _layer_norm_affine(out, g_ref[...], beta_ref[...], eps,
                                    o_ref.dtype)


# ---------------------------------------------------------------------------
# Kernel B: K-split weight (nk > 1).  f32 accumulator scratch + bf16-staged
# activation tile (cast hoisted out of the K loop).
# ---------------------------------------------------------------------------
def _pnr_kernel_ksplit(x_ref, w_ref, b_ref, g_ref, beta_ref, o_ref,
                       acc_ref, xbf_ref, *, scale_residual, eps, tk):
    k = pl.program_id(1)
    nk = pl.num_programs(1)

    @pl.when(k == 0)
    def _stage_x():
        # Cast the whole activation tile to bf16 once per token tile.
        xbf_ref[...] = x_ref[...].astype(jnp.bfloat16)

    col = pl.multiple_of(k * tk, tk)
    dot = jnp.dot(xbf_ref[:, pl.ds(col, tk)], w_ref[...],
                  preferred_element_type=jnp.float32)

    @pl.when(k == 0)
    def _init():
        acc_ref[...] = dot + b_ref[...]              # no memset, bias folded in

    @pl.when(k != 0)
    def _accum():
        acc_ref[...] += dot

    @pl.when(k == nk - 1)
    def _epilogue():
        out = acc_ref[...] + x_ref[...].astype(jnp.float32) * scale_residual
        o_ref[...] = _layer_norm_affine(out, g_ref[...], beta_ref[...], eps,
                                        o_ref.dtype)


# ---------------------------------------------------------------------------
# Tile selection driven by the detected VMEM capacity.
# ---------------------------------------------------------------------------
def _select_tiles(T, D, x_itemsize, out_itemsize, tm_req=None, tk_req=None):
    try:
        info = pltpu.get_tpu_info()
        vmem_cap = int(getattr(info, "vmem_capacity_bytes", 64 * 1024 * 1024))
    except Exception:
        vmem_cap = 64 * 1024 * 1024                  # conservative (v7x per-TC)
    budget = vmem_cap * 3 // 4                       # headroom for compiler scratch

    # ---- token tile: multiple of 128 (MXU rows / bf16 sublane packing) ----
    tm = 512 if tm_req is None else int(tm_req)
    tm = max(128, min(tm, _round_up(T, 128)))
    tm = _round_up(tm, 128)
    # Give both v7x TensorCores work when there are enough tokens.
    if T <= tm and T > 256:
        tm = max(128, _round_up(pl.cdiv(T, 2), 128))

    def fits(tm_, tk_):
        nk_ = D // tk_
        if nk_ == 1:
            w_bytes = D * D * 2                      # resident, single-buffered
            extra = 0                                # no scratch on this path
        else:
            w_bytes = 2 * tk_ * D * 2                # double-buffered K slices
            extra = tm_ * D * 4 + tm_ * D * 2        # f32 acc + bf16 x scratch
        need = (w_bytes + extra
                + 2 * tm_ * D * x_itemsize           # x tiles (double-buffered)
                + 2 * tm_ * D * out_itemsize         # out tiles (double-buffered)
                + 3 * D * 4)                         # bias / gamma / beta
        return need <= budget, need

    # ---- K tile: keep the full (D, D) weight resident when it fits ----
    if tk_req is not None:
        tk = int(tk_req)
        if tk <= 0 or D % tk != 0 or (tk != D and tk % 128 != 0):
            tk = D
    else:
        tk = D
        if not fits(tm, D)[0]:
            for cand in (2048, 1024, 512, 256, 128):
                if cand < D and D % cand == 0 and fits(tm, cand)[0]:
                    tk = cand
                    break

    # Last resort: shrink the token tile instead of hoping the compile fits.
    while not fits(tm, tk)[0] and tm > 128:
        tm = _round_up(max(128, tm // 2), 128)

    _, need = fits(tm, tk)
    vmem_limit = int(min(max(int(need * 3 // 2), 32 * 1024 * 1024),
                         vmem_cap - 4 * 1024 * 1024))
    return tm, tk, vmem_limit


def post_norm_residual(x, w, b, gamma, beta, *, scale_residual=1.0, eps=1e-5,
                       tm=None, tk=None):
    """x: (B, S, D).  fn is Linear(D, D) with weight w (D_in, D_out), bias b."""
    B, S, D = x.shape
    T = B * S
    out_dtype = x.dtype
    out_itemsize = jnp.dtype(out_dtype).itemsize

    tm_, tk_, vmem_limit = _select_tiles(T, D, x.dtype.itemsize, out_itemsize,
                                         tm, tk)
    nk = D // tk_
    nt = pl.cdiv(T, tm_)                             # partial last block OK

    # ---- operand preparation (no padding: grid handles the ragged tail) ----
    x2 = x.reshape(T, D)
    w_lp = w.astype(jnp.bfloat16)                    # MXU-native low precision
    b2 = b.reshape(1, D).astype(jnp.float32)
    g2 = gamma.reshape(1, D).astype(jnp.float32)
    be2 = beta.reshape(1, D).astype(jnp.float32)

    # Weight traffic is re-streamed once per token tile when K-split.
    w_hbm_bytes = (nt if nk > 1 else 1) * D * D * 2
    cost = pl.CostEstimate(
        flops=2 * T * D * D,
        transcendentals=T,                           # one rsqrt per token row
        bytes_accessed=int(T * D * x.dtype.itemsize  # x in
                           + w_hbm_bytes             # bf16 weight
                           + 3 * D * 4               # params
                           + T * D * out_itemsize))  # out

    if nk == 1:
        kernel = functools.partial(_pnr_kernel_fused,
                                   scale_residual=float(scale_residual),
                                   eps=float(eps))
        grid_spec = pltpu.PrefetchScalarGridSpec(
            num_scalar_prefetch=0,
            grid=(nt,),
            in_specs=[
                pl.BlockSpec((tm_, D), lambda i: (i, 0)),                   # x
                _bspec((D, D), lambda i: (0, 0), single_buffer=True),       # W (resident)
                _bspec((1, D), lambda i: (0, 0), single_buffer=True),       # bias
                _bspec((1, D), lambda i: (0, 0), single_buffer=True),       # gamma
                _bspec((1, D), lambda i: (0, 0), single_buffer=True),       # beta
            ],
            out_specs=pl.BlockSpec((tm_, D), lambda i: (i, 0)),
        )
        semantics = ("parallel",)
    else:
        kernel = functools.partial(_pnr_kernel_ksplit,
                                   scale_residual=float(scale_residual),
                                   eps=float(eps), tk=tk_)
        grid_spec = pltpu.PrefetchScalarGridSpec(
            num_scalar_prefetch=0,
            grid=(nt, nk),
            in_specs=[
                pl.BlockSpec((tm_, D), lambda i, k: (i, 0)),                # x (k-invariant)
                # Weight K-slices; default double-buffering. Sweep Buffered(3)
                # only if xprof shows exposed DMA wait on this stream.
                pl.BlockSpec((tk_, D), lambda i, k: (k, 0)),
                _bspec((1, D), lambda i, k: (0, 0), single_buffer=True),    # bias
                _bspec((1, D), lambda i, k: (0, 0), single_buffer=True),    # gamma
                _bspec((1, D), lambda i, k: (0, 0), single_buffer=True),    # beta
            ],
            out_specs=pl.BlockSpec((tm_, D), lambda i, k: (i, 0)),
            scratch_shapes=[pltpu.VMEM((tm_, D), jnp.float32),              # f32 acc
                            pltpu.VMEM((tm_, D), jnp.bfloat16)],            # bf16 x stage
        )
        semantics = ("parallel", "arbitrary")

    out = pl.pallas_call(
        kernel,
        out_shape=jax.ShapeDtypeStruct((T, D), out_dtype),
        grid_spec=grid_spec,
        compiler_params=pltpu.CompilerParams(
            dimension_semantics=semantics,
            vmem_limit_bytes=vmem_limit),
        cost_estimate=cost,
    )(x2, w_lp, b2, g2, be2)

    return out.reshape(B, S, D)


def _reference(x, w, b, gamma, beta, scale_residual=1.0, eps=1e-5):
    # Same bf16-matmul / f32-accumulate numerics as the kernel.
    fn_out = jnp.einsum("bsd,de->bse",
                        x.astype(jnp.bfloat16), w.astype(jnp.bfloat16),
                        preferred_element_type=jnp.float32)
    out = fn_out + b + x.astype(jnp.float32) * scale_residual
    mean = jnp.mean(out, axis=-1, keepdims=True)
    var = jnp.mean((out - mean) ** 2, axis=-1, keepdims=True)
    return (out - mean) * jax.lax.rsqrt(var + eps) * gamma + beta


if __name__ == "__main__":
    key = jax.random.PRNGKey(0)
    kx, kw, kb, kx2 = jax.random.split(key, 4)

    # Small but lane-dense shapes (D multiple of 128 keeps stores unmasked).
    B, S, D = 2, 64, 256
    scale_residual = 0.5

    x = jax.random.normal(kx, (B, S, D), dtype=jnp.float32)
    # fn = Linear(D, D): deterministic init
    w = (jax.random.normal(kw, (D, D), dtype=jnp.float32) / jnp.sqrt(D)).astype(jnp.float32)
    b = jax.random.normal(kb, (D,), dtype=jnp.float32) * 0.01
    # LayerNorm(dim) params: default torch init
    gamma = jnp.ones((D,), dtype=jnp.float32)
    beta = jnp.zeros((D,), dtype=jnp.float32)

    y_ref = _reference(x, w, b, gamma, beta, scale_residual=scale_residual)

    # Path 1: weight resident as a single tile (nk == 1, no accumulator scratch).
    y1 = jax.block_until_ready(
        post_norm_residual(x, w, b, gamma, beta, scale_residual=scale_residual))
    # Path 2: K-split weight (nk == 2) exercising acc init/accumulate/epilogue.
    y2 = jax.block_until_ready(
        post_norm_residual(x, w, b, gamma, beta, scale_residual=scale_residual,
                           tk=128))
    assert y1.shape == (B, S, D) and y2.shape == (B, S, D)
    assert jnp.allclose(y1, y_ref, atol=2e-2, rtol=2e-2), "mismatch (nk=1)"
    assert jnp.allclose(y2, y_ref, atol=2e-2, rtol=2e-2), "mismatch (nk=2)"

    # Path 3: ragged token count (partial last block, no wrapper-side pad).
    S3 = 50
    x3 = jax.random.normal(kx2, (B, S3, D), dtype=jnp.float32)
    y3_ref = _reference(x3, w, b, gamma, beta, scale_residual=scale_residual)
    y3 = jax.block_until_ready(
        post_norm_residual(x3, w, b, gamma, beta, scale_residual=scale_residual))
    assert y3.shape == (B, S3, D)
    assert jnp.allclose(y3, y3_ref, atol=2e-2, rtol=2e-2), "mismatch (ragged)"

    print("KERNEL_OK")
</pallas_src>

<mosaic_0001>
module attributes {stable_mosaic.version = 11 : i64} {
  func.func @_pnr_kernel_fused(%arg0: i32, %arg1: memref<128x256xf32, #tpu.memory_space<vmem>>, %arg2: memref<256x256xbf16, #tpu.memory_space<vmem>>, %arg3: memref<1x256xf32, #tpu.memory_space<vmem>>, %arg4: memref<1x256xf32, #tpu.memory_space<vmem>>, %arg5: memref<1x256xf32, #tpu.memory_space<vmem>>, %arg6: memref<128x256xf32, #tpu.memory_space<vmem>>) attributes {dimension_semantics = [#tpu.dimension_semantics<parallel>], iteration_bounds = array<i64: 1>, scalar_prefetch = 0 : i64, scratch_operands = 0 : i64, tpu.core_type = #tpu.core_type<tc>, window_params = [{transform_indices = @transform_0, window_bounds = array<i64: 128, 256>}, {pipeline_mode = #tpu.pipeline_mode<synchronous>, transform_indices = @transform_1, window_bounds = array<i64: 256, 256>}, {pipeline_mode = #tpu.pipeline_mode<synchronous>, transform_indices = @transform_2, window_bounds = array<i64: 1, 256>}, {pipeline_mode = #tpu.pipeline_mode<synchronous>, transform_indices = @transform_3, window_bounds = array<i64: 1, 256>}, {pipeline_mode = #tpu.pipeline_mode<synchronous>, transform_indices = @transform_4, window_bounds = array<i64: 1, 256>}, {transform_indices = @transform_5, window_bounds = array<i64: 128, 256>}]} {
    %c0 = arith.constant 0 : index
    %c0_0 = arith.constant 0 : index
    %0 = vector.load %arg1[%c0, %c0_0] : memref<128x256xf32, #tpu.memory_space<vmem>>, vector<128x256xf32>
    %1 = arith.truncf %0 : vector<128x256xf32> to vector<128x256xbf16>
    %c0_1 = arith.constant 0 : index
    %c0_2 = arith.constant 0 : index
    %2 = vector.load %arg2[%c0_1, %c0_2] : memref<256x256xbf16, #tpu.memory_space<vmem>>, vector<256x256xbf16>
    %cst = arith.constant dense<0.000000e+00> : vector<128x256xf32>
    %3 = tpu.matmul %1, %2, %cst {dimension_numbers = #tpu.dot_dimension_numbers<[1], [0], [0], [1], [0, 0, 1, 1], [], []>} : vector<128x256xbf16>, vector<256x256xbf16>, vector<128x256xf32> -> vector<128x256xf32>
    %c0_3 = arith.constant 0 : index
    %c0_4 = arith.constant 0 : index
    %4 = vector.load %arg3[%c0_3, %c0_4] : memref<1x256xf32, #tpu.memory_space<vmem>>, vector<1x256xf32>
    %5 = vector.broadcast %4 : vector<1x256xf32> to vector<128x256xf32>
    %6 = arith.addf %3, %5 : vector<128x256xf32>
    %cst_5 = arith.constant 5.000000e-01 : f32
    %7 = vector.broadcast %cst_5 : f32 to vector<128x256xf32>
    %8 = arith.mulf %0, %7 : vector<128x256xf32>
    %9 = arith.addf %6, %8 : vector<128x256xf32>
    %c0_6 = arith.constant 0 : index
    %c0_7 = arith.constant 0 : index
    %10 = vector.load %arg4[%c0_6, %c0_7] : memref<1x256xf32, #tpu.memory_space<vmem>>, vector<1x256xf32>
    %c0_8 = arith.constant 0 : index
    %c0_9 = arith.constant 0 : index
    %11 = vector.load %arg5[%c0_8, %c0_9] : memref<1x256xf32, #tpu.memory_space<vmem>>, vector<1x256xf32>
    %cst_10 = arith.constant dense<0.000000e+00> : vector<128xf32>
    %12 = vector.multi_reduction <add>, %9, %cst_10 [1] : vector<128x256xf32> to vector<128xf32>
    %13 = vector.shape_cast %12 : vector<128xf32> to vector<128x1xf32>
    %14 = arith.mulf %9, %9 : vector<128x256xf32>
    %cst_11 = arith.constant dense<0.000000e+00> : vector<128xf32>
    %15 = vector.multi_reduction <add>, %14, %cst_11 [1] : vector<128x256xf32> to vector<128xf32>
    %16 = vector.shape_cast %15 : vector<128xf32> to vector<128x1xf32>
    %cst_12 = arith.constant 3.906250e-03 : f32
    %17 = vector.broadcast %cst_12 : f32 to vector<128x1xf32>
    %18 = arith.mulf %13, %17 : vector<128x1xf32>
    %cst_13 = arith.constant 3.906250e-03 : f32
    %19 = vector.broadcast %cst_13 : f32 to vector<128x1xf32>
    %20 = arith.mulf %16, %19 : vector<128x1xf32>
    %21 = arith.mulf %18, %18 : vector<128x1xf32>
    %22 = arith.subf %20, %21 : vector<128x1xf32>
    %cst_14 = arith.constant 0.000000e+00 : f32
    %23 = vector.broadcast %cst_14 : f32 to vector<128x1xf32>
    %24 = arith.maximumf %22, %23 : vector<128x1xf32>
    %25 = vector.broadcast %18 : vector<128x1xf32> to vector<128x256xf32>
    %26 = arith.subf %9, %25 : vector<128x256xf32>
    %cst_15 = arith.constant 9.99999974E-6 : f32
    %27 = vector.broadcast %cst_15 : f32 to vector<128x1xf32>
    %28 = arith.addf %24, %27 : vector<128x1xf32>
    %29 = math.rsqrt %28 : vector<128x1xf32>
    %30 = vector.broadcast %29 : vector<128x1xf32> to vector<128x256xf32>
    %31 = arith.mulf %26, %30 : vector<128x256xf32>
    %32 = vector.broadcast %10 : vector<1x256xf32> to vector<128x256xf32>
    %33 = arith.mulf %31, %32 : vector<128x256xf32>
    %34 = vector.broadcast %11 : vector<1x256xf32> to vector<128x256xf32>
    %35 = arith.addf %33, %34 : vector<128x256xf32>
    %c0_16 = arith.constant 0 : index
    %c0_17 = arith.constant 0 : index
    %36 = vector.load %arg6[%c0_16, %c0_17] : memref<128x256xf32, #tpu.memory_space<vmem>>, vector<128x256xf32>
    tpu.vector_store %arg6[%c0_16, %c0_17], %35 {strides = array<i32>} : memref<128x256xf32, #tpu.memory_space<vmem>>, vector<128x256xf32>,
    return
  }
  func.func @transform_0(%arg0: i32) -> (i32, i32) {
    %c0_i32 = arith.constant 0 : i32
    %c0_i32_0 = arith.constant 0 : i32
    return %arg0, %c0_i32 : i32, i32
  }
  func.func @transform_1(%arg0: i32) -> (i32, i32) {
    %c0_i32 = arith.constant 0 : i32
    %c0_i32_0 = arith.constant 0 : i32
    %c0_i32_1 = arith.constant 0 : i32
    return %c0_i32, %c0_i32_0 : i32, i32
  }
  func.func @transform_2(%arg0: i32) -> (i32, i32) {
    %c0_i32 = arith.constant 0 : i32
    %c0_i32_0 = arith.constant 0 : i32
    %c0_i32_1 = arith.constant 0 : i32
    return %c0_i32, %c0_i32_0 : i32, i32
  }
  func.func @transform_3(%arg0: i32) -> (i32, i32) {
    %c0_i32 = arith.constant 0 : i32
    %c0_i32_0 = arith.constant 0 : i32
    %c0_i32_1 = arith.constant 0 : i32
    return %c0_i32, %c0_i32_0 : i32, i32
  }
  func.func @transform_4(%arg0: i32) -> (i32, i32) {
    %c0_i32 = arith.constant 0 : i32
    %c0_i32_0 = arith.constant 0 : i32
    %c0_i32_1 = arith.constant 0 : i32
    return %c0_i32, %c0_i32_0 : i32, i32
  }
  func.func @transform_5(%arg0: i32) -> (i32, i32) {
    %c0_i32 = arith.constant 0 : i32
    %c0_i32_0 = arith.constant 0 : i32
    return %arg0, %c0_i32 : i32, i32
  }
}

</mosaic_0001>

<llo_original>
// kernel: tpu_custom_call.1
$region0: #{tpu_custom_call.1}
  #allocation0 [shape = 'u32[]', space=smem, size = 0x4, offset = 0x4, fixed_abs, tag = 'smem constant byte address 0x4 - core index']
  #allocation1 [shape = 'u32[144,128]{1,0:T(1,128)}', space=vmem, size = 0x12000, scoped, tag = 'internal scratch']
  %s0 = inlined_call_operand.hbm [shape: f32[128,256], index: 0, kind: input, shape index: {}]
  %s1 = inlined_call_operand.hbm [shape: bf16[256,256], index: 1, kind: input, shape index: {}]
  %s2 = inlined_call_operand.vmem [shape: f32[1,256], index: 2, kind: input, shape index: {}]
  %s3 = inlined_call_operand.vmem [shape: f32[1,256], index: 3, kind: input, shape index: {}]
  %s4 = inlined_call_operand.vmem [shape: f32[1,256], index: 4, kind: input, shape index: {}]
  %s5 = inlined_call_operand.hbm [shape: f32[128,256], index: 5, kind: output, shape index: {}]
  %s6 = sld [smem:[#allocation0]]
  $region38: #{tpu_custom_call.1} parent=0
    _
  %s8 = ssub.s32 1, %s6
  %s9 = scalar_select 0, %s8, %s6
  $region1: #{tpu_custom_call.1} parent=0
    #allocation2 [shape = 'u8[131072]{0}', space=vmem, size = 0x20000, scoped, tag = 'input window, operand 0, single buffered']
    #allocation3 [shape = 's32[1]{0}', space=sflag, size = 0x4, scoped, tag = 'scoped memory for tpu_custom_call.1']
    #allocation4 [shape = 's32[1]{0}', space=sflag, size = 0x4, scoped, tag = 'scoped memory for tpu_custom_call.1']
    #allocation5 [shape = 'u8[131072]{0}', space=vmem, size = 0x20000, scoped, tag = 'input window, operand 1, single buffered']
    #allocation6 [shape = 's32[1]{0}', space=sflag, size = 0x4, scoped, tag = 'scoped memory for tpu_custom_call.1']
    #allocation7 [shape = 'u8[131072]{0}', space=vmem, size = 0x20000, scoped, tag = 'output window, operand 0, single buffered']
    %10 = vsyncpa [#allocation3], 0
    %11 = vsyncpa [#allocation6], 0
    %12 = vsyncpa [#allocation4], 0
    // Predicated region
    $region2: #{tpu_custom_call.1} parent=1 // pred_check
      _
    $region3: #{tpu_custom_call.1} parent=1 // pred_check_branch
      %14 = sbr.rel (0) target = $region5
    $region4: #{tpu_custom_call.1} parent=1 // pred_region
      %s16 = ssub.s32 4096, 4096
      %17 = vsyncadd [#allocation3], %s16
      %s18 = sshll.u32 [#allocation2], 4
      %s19 = int_to_ptr.vmem [resolvable:$true] %s18
      %24 = dma.hbm_to_vmem [thread:$0]  %s0, 4096, %s19, [#allocation3], 256, 256, 16
    $region5: #{tpu_custom_call.1} parent=1 // pred_fallthru
      _
    // Predicated region
    $region6: #{tpu_custom_call.1} parent=1 // pred_check
      _
    $region7: #{tpu_custom_call.1} parent=1 // pred_check_branch
      %26 = sbr.rel (0) target = $region9
    $region8: #{tpu_custom_call.1} parent=1 // pred_region
      %s28 = ssub.s32 4096, 4096
      %29 = vsyncadd [#allocation6], %s28
      %s30 = sshll.u32 [#allocation5], 4
      %s31 = int_to_ptr.vmem [resolvable:$true] %s30
      %36 = dma.hbm_to_vmem [thread:$0]  %s1, 4096, %s31, [#allocation6], 128, 128, 8
    $region9: #{tpu_custom_call.1} parent=1 // pred_fallthru
      _
    // Predicated region
    $region10: #{tpu_custom_call.1} parent=1 // pred_check
      _
    $region11: #{tpu_custom_call.1} parent=1 // pred_check_branch
      %38 = sbr.rel (0) target = $region13
    $region12: #{tpu_custom_call.1} parent=1 // pred_region
      _
    $region13: #{tpu_custom_call.1} parent=1 // pred_fallthru
      _
    // Predicated region
    $region14: #{tpu_custom_call.1} parent=1 // pred_check
      _
    $region15: #{tpu_custom_call.1} parent=1 // pred_check_branch
      %40 = sbr.rel (0) target = $region17
    $region16: #{tpu_custom_call.1} parent=1 // pred_region
      _
    $region17: #{tpu_custom_call.1} parent=1 // pred_fallthru
      _
    // Predicated region
    $region18: #{tpu_custom_call.1} parent=1 // pred_check
      _
    $region19: #{tpu_custom_call.1} parent=1 // pred_check_branch
      %42 = sbr.rel (0) target = $region21
    $region20: #{tpu_custom_call.1} parent=1 // pred_region
      _
    $region21: #{tpu_custom_call.1} parent=1 // pred_fallthru
      _
    // Predicated region
    $region22: #{tpu_custom_call.1} parent=1 // pred_check
      _
    $region23: #{tpu_custom_call.1} parent=1 // pred_check_branch
      %44 = sbr.rel (0) target = $region25
    $region24: #{tpu_custom_call.1} parent=1 // pred_region
      %45 = dma.done [#allocation3], 4096
    $region25: #{tpu_custom_call.1} parent=1 // pred_fallthru
      _
    // Predicated region
    $region26: #{tpu_custom_call.1} parent=1 // pred_check
      _
    $region27: #{tpu_custom_call.1} parent=1 // pred_check_branch
      %47 = sbr.rel (0) target = $region29
    $region28: #{tpu_custom_call.1} parent=1 // pred_region
      %48 = dma.done [#allocation6], 4096
    $region29: #{tpu_custom_call.1} parent=1 // pred_fallthru
      _
    %v49 = vld [vmem:[#allocation2] sm:$0xff]
    %v50 = vld [vmem:[#allocation2 + $0x8] sm:$0xff]
    %v51 = vld [vmem:[#allocation2 + $0x10] sm:$0xff]
    %v52 = vld [vmem:[#allocation2 + $0x18] sm:$0xff]
    %v53 = vld [vmem:[#allocation2 + $0x20] sm:$0xff]
    %v54 = vld [vmem:[#allocation2 + $0x28] sm:$0xff]
    %v55 = vld [vmem:[#allocation2 + $0x30] sm:$0xff]
    %v56 = vld [vmem:[#allocation2 + $0x38] sm:$0xff]
    %v57 = vld [vmem:[#allocation2 + $0x40] sm:$0xff]
    %v58 = vld [vmem:[#allocation2 + $0x48] sm:$0xff]
    %v59 = vld [vmem:[#allocation2 + $0x50] sm:$0xff]
    %v60 = vld [vmem:[#allocation2 + $0x58] sm:$0xff]
    %v61 = vld [vmem:[#allocation2 + $0x60] sm:$0xff]
    %v62 = vld [vmem:[#allocation2 + $0x68] sm:$0xff]
    %v63 = vld [vmem:[#allocation2 + $0x70] sm:$0xff]
    %v64 = vld [vmem:[#allocation2 + $0x78] sm:$0xff]
    %v65 = vld [vmem:[#allocation2 + $0x80] sm:$0xff]
    %v66 = vld [vmem:[#allocation2 + $0x88] sm:$0xff]
    %v67 = vld [vmem:[#allocation2 + $0x90] sm:$0xff]
    %v68 = vld [vmem:[#allocation2 + $0x98] sm:$0xff]
    %v69 = vld [vmem:[#allocation2 + $0xa0] sm:$0xff]
    %v70 = vld [vmem:[#allocation2 + $0xa8] sm:$0xff]
    %v71 = vld [vmem:[#allocation2 + $0xb0] sm:$0xff]
    %v72 = vld [vmem:[#allocation2 + $0xb8] sm:$0xff]
    %v73 = vld [vmem:[#allocation2 + $0xc0] sm:$0xff]
    %v74 = vld [vmem:[#allocation2 + $0xc8] sm:$0xff]
    %v75 = vld [vmem:[#allocation2 + $0xd0] sm:$0xff]
    %v76 = vld [vmem:[#allocation2 + $0xd8] sm:$0xff]
    %v77 = vld [vmem:[#allocation2 + $0xe0] sm:$0xff]
    %v78 = vld [vmem:[#allocation2 + $0xe8] sm:$0xff]
    %v79 = vld [vmem:[#allocation2 + $0xf0] sm:$0xff]
    %v80 = vld [vmem:[#allocation2 + $0xf8] sm:$0xff]
    %v81 = vpack.c.bf16 %v51, %v49
    %v82 = vpack.c.bf16 %v52, %v50
    %v83 = vpack.c.bf16 %v55, %v53
    %v84 = vpack.c.bf16 %v56, %v54
    %v85 = vpack.c.bf16 %v59, %v57
    %v86 = vpack.c.bf16 %v60, %v58
    %v87 = vpack.c.bf16 %v63, %v61
    %v88 = vpack.c.bf16 %v64, %v62
    %v89 = vpack.c.bf16 %v67, %v65
    %v90 = vpack.c.bf16 %v68, %v66
    %v91 = vpack.c.bf16 %v71, %v69
    %v92 = vpack.c.bf16 %v72, %v70
    %v93 = vpack.c.bf16 %v75, %v73
    %v94 = vpack.c.bf16 %v76, %v74
    %v95 = vpack.c.bf16 %v79, %v77
    %v96 = vpack.c.bf16 %v80, %v78
    %v97 = vld [vmem:[#allocation5] sm:$0xff]
    %v98 = vld [vmem:[#allocation5 + $0x8] sm:$0xff]
    %v99 = vld [vmem:[#allocation5 + $0x10] sm:$0xff]
    %v100 = vld [vmem:[#allocation5 + $0x18] sm:$0xff]
    %v101 = vld [vmem:[#allocation5 + $0x20] sm:$0xff]
    %v102 = vld [vmem:[#allocation5 + $0x28] sm:$0xff]
    %v103 = vld [vmem:[#allocation5 + $0x30] sm:$0xff]
    %v104 = vld [vmem:[#allocation5 + $0x38] sm:$0xff]
    %v105 = vld [vmem:[#allocation5 + $0x40] sm:$0xff]
    %v106 = vld [vmem:[#allocation5 + $0x48] sm:$0xff]
    %v107 = vld [vmem:[#allocation5 + $0x50] sm:$0xff]
    %v108 = vld [vmem:[#allocation5 + $0x58] sm:$0xff]
    %v109 = vld [vmem:[#allocation5 + $0x60] sm:$0xff]
    %v110 = vld [vmem:[#allocation5 + $0x68] sm:$0xff]
    %v111 = vld [vmem:[#allocation5 + $0x70] sm:$0xff]
    %v112 = vld [vmem:[#allocation5 + $0x78] sm:$0xff]
    %v113 = vld [vmem:[#allocation5 + $0x80] sm:$0xff]
    %v114 = vld [vmem:[#allocation5 + $0x88] sm:$0xff]
    %v115 = vld [vmem:[#allocation5 + $0x90] sm:$0xff]
    %v116 = vld [vmem:[#allocation5 + $0x98] sm:$0xff]
    %v117 = vld [vmem:[#allocation5 + $0xa0] sm:$0xff]
    %v118 = vld [vmem:[#allocation5 + $0xa8] sm:$0xff]
    %v119 = vld [vmem:[#allocation5 + $0xb0] sm:$0xff]
    %v120 = vld [vmem:[#allocation5 + $0xb8] sm:$0xff]
    %v121 = vld [vmem:[#allocation5 + $0xc0] sm:$0xff]
    %v122 = vld [vmem:[#allocation5 + $0xc8] sm:$0xff]
    %v123 = vld [vmem:[#allocation5 + $0xd0] sm:$0xff]
    %v124 = vld [vmem:[#allocation5 + $0xd8] sm:$0xff]
    %v125 = vld [vmem:[#allocation5 + $0xe0] sm:$0xff]
    %v126 = vld [vmem:[#allocation5 + $0xe8] sm:$0xff]
    %v127 = vld [vmem:[#allocation5 + $0xf0] sm:$0xff]
    %v128 = vld [vmem:[#allocation5 + $0xf8] sm:$0xff]
    %v129 = vld [vmem:[%s2] sm:$0x3]
    %v131 = vlaneseq
    %v132 = vshrl.u32 %v131, 7
    %v133 = vsub.s32 0, %v132
    %v134 = vrot.slane %v129, %v133
    %v135 = vlaneseq
    %v136 = vshrl.u32 %v135, 7
    %v137 = vsub.s32 1, %v136
    %v138 = vrot.slane %v129, %v137
    %v173 = vunpack.c.l.b16 %v97
    %v174 = vunpack.c.h.b16 %v97
    %v175 = vunpack.c.l.b16 %v98
    %v176 = vunpack.c.h.b16 %v98
    %v177 = vunpack.c.l.b16 %v99
    %v178 = vunpack.c.h.b16 %v99
    %v179 = vunpack.c.l.b16 %v100
    %v180 = vunpack.c.h.b16 %v100
    %v181 = vunpack.c.l.b16 %v101
    %v182 = vunpack.c.h.b16 %v101
    %v183 = vunpack.c.l.b16 %v102
    %v184 = vunpack.c.h.b16 %v102
    %v185 = vunpack.c.l.b16 %v103
    %v186 = vunpack.c.h.b16 %v103
    %v187 = vunpack.c.l.b16 %v104
    %v188 = vunpack.c.h.b16 %v104
    %v189 = vunpack.c.l.b16 %v105
    %v190 = vunpack.c.h.b16 %v105
    %v191 = vunpack.c.l.b16 %v106
    %v192 = vunpack.c.h.b16 %v106
    %v193 = vunpack.c.l.b16 %v107
    %v194 = vunpack.c.h.b16 %v107
    %v195 = vunpack.c.l.b16 %v108
    %v196 = vunpack.c.h.b16 %v108
    %v197 = vunpack.c.l.b16 %v109
    %v198 = vunpack.c.h.b16 %v109
    %v199 = vunpack.c.l.b16 %v110
    %v200 = vunpack.c.h.b16 %v110
    %v201 = vunpack.c.l.b16 %v111
    %v202 = vunpack.c.h.b16 %v111
    %v203 = vunpack.c.l.b16 %v112
    %v204 = vunpack.c.h.b16 %v112
    %v205 = vunpack.c.l.b16 %v113
    %v206 = vunpack.c.h.b16 %v113
    %v207 = vunpack.c.l.b16 %v114
    %v208 = vunpack.c.h.b16 %v114
    %v209 = vunpack.c.l.b16 %v115
    %v210 = vunpack.c.h.b16 %v115
    %v211 = vunpack.c.l.b16 %v116
    %v212 = vunpack.c.h.b16 %v116
    %v213 = vunpack.c.l.b16 %v117
    %v214 = vunpack.c.h.b16 %v117
    %v215 = vunpack.c.l.b16 %v118
    %v216 = vunpack.c.h.b16 %v118
    %v217 = vunpack.c.l.b16 %v119
    %v218 = vunpack.c.h.b16 %v119
    %v219 = vunpack.c.l.b16 %v120
    %v220 = vunpack.c.h.b16 %v120
    %v221 = vunpack.c.l.b16 %v121
    %v222 = vunpack.c.h.b16 %v121
    %v223 = vunpack.c.l.b16 %v122
    %v224 = vunpack.c.h.b16 %v122
    %v225 = vunpack.c.l.b16 %v123
    %v226 = vunpack.c.h.b16 %v123
    %v227 = vunpack.c.l.b16 %v124
    %v228 = vunpack.c.h.b16 %v124
    %v229 = vunpack.c.l.b16 %v125
    %v230 = vunpack.c.h.b16 %v125
    %v231 = vunpack.c.l.b16 %v126
    %v232 = vunpack.c.h.b16 %v126
    %v233 = vunpack.c.l.b16 %v127
    %v234 = vunpack.c.h.b16 %v127
    %v235 = vunpack.c.l.b16 %v128
    %v236 = vunpack.c.h.b16 %v128
    %v237 = vpack.c.b16 %v175, %v173
    %v238 = vpack.c.b16 %v176, %v174
    %v239 = vpack.c.b16 %v179, %v177
    %v240 = vpack.c.b16 %v180, %v178
    %v241 = vpack.c.b16 %v183, %v181
    %v242 = vpack.c.b16 %v184, %v182
    %v243 = vpack.c.b16 %v187, %v185
    %v244 = vpack.c.b16 %v188, %v186
    %v245 = vpack.c.b16 %v191, %v189
    %v246 = vpack.c.b16 %v192, %v190
    %v247 = vpack.c.b16 %v195, %v193
    %v248 = vpack.c.b16 %v196, %v194
    %v249 = vpack.c.b16 %v199, %v197
    %v250 = vpack.c.b16 %v200, %v198
    %v251 = vpack.c.b16 %v203, %v201
    %v252 = vpack.c.b16 %v204, %v202
    %v253 = vpack.c.b16 %v207, %v205
    %v254 = vpack.c.b16 %v208, %v206
    %v255 = vpack.c.b16 %v211, %v209
    %v256 = vpack.c.b16 %v212, %v210
    %v257 = vpack.c.b16 %v215, %v213
    %v258 = vpack.c.b16 %v216, %v214
    %v259 = vpack.c.b16 %v219, %v217
    %v260 = vpack.c.b16 %v220, %v218
    %v261 = vpack.c.b16 %v223, %v221
    %v262 = vpack.c.b16 %v224, %v222
    %v263 = vpack.c.b16 %v227, %v225
    %v264 = vpack.c.b16 %v228, %v226
    %v265 = vpack.c.b16 %v231, %v229
    %v266 = vpack.c.b16 %v232, %v230
    %v267 = vpack.c.b16 %v235, %v233
    %v268 = vpack.c.b16 %v236, %v234
    %301 = vmatprep.subr.bf16.mxu0 %v252
    %302 = vmatpush1.bf16.msra.mxu0 %v251
    %303 = vmatprep.subr.bf16.mxu0 %v250
    %304 = vmatpush1.bf16.msra.mxu0 %v249
    %305 = vmatprep.subr.bf16.mxu0 %v248
    %306 = vmatpush1.bf16.msra.mxu0 %v247
    %307 = vmatprep.subr.bf16.mxu0 %v246
    %308 = vmatpush1.bf16.msra.mxu0 %v245
    %309 = vmatprep.subr.bf16.mxu0 %v244
    %310 = vmatpush1.bf16.msra.mxu0 %v243
    %311 = vmatprep.subr.bf16.mxu0 %v242
    %312 = vmatpush1.bf16.msra.mxu0 %v241
    %313 = vmatprep.subr.bf16.mxu0 %v240
    %314 = vmatpush1.bf16.msra.mxu0 %v239
    %315 = vmatprep.subr.bf16.mxu0 %v238
    %316 = vmatpush1.bf16.msra.mxu0 %v237
    %317 = vmatprep.subr.bf16.mxu0 %v268
    %318 = vmatpush2.bf16.msra.mxu0 %v267
    %319 = vmatprep.subr.bf16.mxu0 %v266
    %320 = vmatpush2.bf16.msra.mxu0 %v265
    %321 = vmatprep.subr.bf16.mxu0 %v264
    %322 = vmatpush2.bf16.msra.mxu0 %v263
    %323 = vmatprep.subr.bf16.mxu0 %v262
    %324 = vmatpush2.bf16.msra.mxu0 %v261
    %325 = vmatprep.subr.bf16.mxu0 %v260
    %326 = vmatpush2.bf16.msra.mxu0 %v259
    %327 = vmatprep.subr.bf16.mxu0 %v258
    %328 = vmatpush2.bf16.msra.mxu0 %v257
    %329 = vmatprep.subr.bf16.mxu0 %v256
    %330 = vmatpush2.bf16.msra.mxu0 %v255
    %331 = vmatprep.subr.bf16.mxu0 %v254
    %332 = vmatpush2.bf16.msra.mxu0 %v253
    %333 = vmatprep.mubr.bf16.mxu0 %v82
    %334 = vmatmul.mubr.bf16.gmra.mxu0 %v81
    %v335 = vpop.f32.mrf.mxu0
    %v336 = vadd.f32 %v134, %v335
    %v337 = vpop.f32.mrf.mxu0
    %v338 = vadd.f32 %v138, %v337
    %v339 = vpop.f32.mrf.mxu0
    %v340 = vadd.f32 %v134, %v339
    %v341 = vpop.f32.mrf.mxu0
    %v342 = vadd.f32 %v138, %v341
    %343 = vmatprep.mubr.bf16.mxu0 %v84
    %344 = vmatmul.mubr.bf16.gmra.mxu0 %v83
    %v345 = vpop.f32.mrf.mxu0
    %v346 = vadd.f32 %v134, %v345
    %v347 = vpop.f32.mrf.mxu0
    %v348 = vadd.f32 %v138, %v347
    %v349 = vpop.f32.mrf.mxu0
    %v350 = vadd.f32 %v134, %v349
    %v351 = vpop.f32.mrf.mxu0
    %v352 = vadd.f32 %v138, %v351
    %353 = vmatprep.mubr.bf16.mxu0 %v86
    %354 = vmatmul.mubr.bf16.gmra.mxu0 %v85
    %v355 = vpop.f32.mrf.mxu0
    %v356 = vadd.f32 %v134, %v355
    %v357 = vpop.f32.mrf.mxu0
    %v358 = vadd.f32 %v138, %v357
    %v359 = vpop.f32.mrf.mxu0
    %v360 = vadd.f32 %v134, %v359
    %v361 = vpop.f32.mrf.mxu0
    %v362 = vadd.f32 %v138, %v361
    %363 = vmatprep.mubr.bf16.mxu0 %v88
    %364 = vmatmul.mubr.bf16.gmra.mxu0 %v87
    %v365 = vpop.f32.mrf.mxu0
    %v366 = vadd.f32 %v134, %v365
    %v367 = vpop.f32.mrf.mxu0
    %v368 = vadd.f32 %v138, %v367
    %v369 = vpop.f32.mrf.mxu0
    %v370 = vadd.f32 %v134, %v369
    %v371 = vpop.f32.mrf.mxu0
    %v372 = vadd.f32 %v138, %v371
    %373 = vmatprep.mubr.bf16.mxu0 %v90
    %374 = vmatmul.mubr.bf16.gmra.mxu0 %v89
    %v375 = vpop.f32.mrf.mxu0
    %v376 = vadd.f32 %v134, %v375
    %v377 = vpop.f32.mrf.mxu0
    %v378 = vadd.f32 %v138, %v377
    %v379 = vpop.f32.mrf.mxu0
    %v380 = vadd.f32 %v134, %v379
    %v381 = vpop.f32.mrf.mxu0
    %v382 = vadd.f32 %v138, %v381
    %383 = vmatprep.mubr.bf16.mxu0 %v92
    %384 = vmatmul.mubr.bf16.gmra.mxu0 %v91
    %v385 = vpop.f32.mrf.mxu0
    %v386 = vadd.f32 %v134, %v385
    %v387 = vpop.f32.mrf.mxu0
    %v388 = vadd.f32 %v138, %v387
    %v389 = vpop.f32.mrf.mxu0
    %v390 = vadd.f32 %v134, %v389
    %v391 = vpop.f32.mrf.mxu0
    %v392 = vadd.f32 %v138, %v391
    %393 = vmatprep.mubr.bf16.mxu0 %v94
    %394 = vmatmul.mubr.bf16.gmra.mxu0 %v93
    %v395 = vpop.f32.mrf.mxu0
    %v396 = vadd.f32 %v134, %v395
    %v397 = vpop.f32.mrf.mxu0
    %v398 = vadd.f32 %v138, %v397
    %v399 = vpop.f32.mrf.mxu0
    %v400 = vadd.f32 %v134, %v399
    %v401 = vpop.f32.mrf.mxu0
    %v402 = vadd.f32 %v138, %v401
    %403 = vmatprep.mubr.bf16.mxu0 %v96
    %404 = vmatmul.mubr.bf16.gmra.mxu0 %v95
    %v405 = vpop.f32.mrf.mxu0
    %v406 = vadd.f32 %v134, %v405
    %v407 = vpop.f32.mrf.mxu0
    %v408 = vadd.f32 %v138, %v407
    %v409 = vpop.f32.mrf.mxu0
    %v410 = vadd.f32 %v134, %v409
    %v411 = vpop.f32.mrf.mxu0
    %v412 = vadd.f32 %v138, %v411
    %413 = vdwg.mxu0
    %v414 = vmul.f32 %v49, 0.5
    %v415 = vmul.f32 %v50, 0.5
    %v416 = vmul.f32 %v51, 0.5
    %v417 = vmul.f32 %v52, 0.5
    %v418 = vmul.f32 %v53, 0.5
    %v419 = vmul.f32 %v54, 0.5
    %v420 = vmul.f32 %v55, 0.5
    %v421 = vmul.f32 %v56, 0.5
    %v422 = vmul.f32 %v57, 0.5
    %v423 = vmul.f32 %v58, 0.5
    %v424 = vmul.f32 %v59, 0.5
    %v425 = vmul.f32 %v60, 0.5
    %v426 = vmul.f32 %v61, 0.5
    %v427 = vmul.f32 %v62, 0.5
    %v428 = vmul.f32 %v63, 0.5
    %v429 = vmul.f32 %v64, 0.5
    %v430 = vmul.f32 %v65, 0.5
    %v431 = vmul.f32 %v66, 0.5
    %v432 = vmul.f32 %v67, 0.5
    %v433 = vmul.f32 %v68, 0.5
    %v434 = vmul.f32 %v69, 0.5
    %v435 = vmul.f32 %v70, 0.5
    %v436 = vmul.f32 %v71, 0.5
    %v437 = vmul.f32 %v72, 0.5
    %v438 = vmul.f32 %v73, 0.5
    %v439 = vmul.f32 %v74, 0.5
    %v440 = vmul.f32 %v75, 0.5
    %v441 = vmul.f32 %v76, 0.5
    %v442 = vmul.f32 %v77, 0.5
    %v443 = vmul.f32 %v78, 0.5
    %v444 = vmul.f32 %v79, 0.5
    %v445 = vmul.f32 %v80, 0.5
    %v446 = vadd.f32 %v336, %v414
    %v447 = vadd.f32 %v338, %v415
    %v448 = vadd.f32 %v340, %v416
    %v449 = vadd.f32 %v342, %v417
    %v450 = vadd.f32 %v346, %v418
    %v451 = vadd.f32 %v348, %v419
    %v452 = vadd.f32 %v350, %v420
    %v453 = vadd.f32 %v352, %v421
    %v454 = vadd.f32 %v356, %v422
    %v455 = vadd.f32 %v358, %v423
    %v456 = vadd.f32 %v360, %v424
    %v457 = vadd.f32 %v362, %v425
    %v458 = vadd.f32 %v366, %v426
    %v459 = vadd.f32 %v368, %v427
    %v460 = vadd.f32 %v370, %v428
    %v461 = vadd.f32 %v372, %v429
    %v462 = vadd.f32 %v376, %v430
    %v463 = vadd.f32 %v378, %v431
    %v464 = vadd.f32 %v380, %v432
    %v465 = vadd.f32 %v382, %v433
    %v466 = vadd.f32 %v386, %v434
    %v467 = vadd.f32 %v388, %v435
    %v468 = vadd.f32 %v390, %v436
    %v469 = vadd.f32 %v392, %v437
    %v470 = vadd.f32 %v396, %v438
    %v471 = vadd.f32 %v398, %v439
    %v472 = vadd.f32 %v400, %v440
    %v473 = vadd.f32 %v402, %v441
    %v474 = vadd.f32 %v406, %v442
    %v475 = vadd.f32 %v408, %v443
    %v476 = vadd.f32 %v410, %v444
    %v477 = vadd.f32 %v412, %v445
    %v478 = vld [vmem:[%s3] sm:$0x3]
    %v479 = vld [vmem:[%s4] sm:$0x3]
    %v480 = vadd.f32 %v446, %v447
    %481 = vadd.xlane.f32.xlu0 %v480
    %v482 = vpop.xlane.xlu0 %481
    %v483 = vadd.f32 %v448, %v449
    %484 = vadd.xlane.f32.xlu0 %v483
    %v485 = vpop.xlane.xlu0 %484
    %v486 = vadd.f32 %v450, %v451
    %487 = vadd.xlane.f32.xlu0 %v486
    %v488 = vpop.xlane.xlu0 %487
    %v489 = vadd.f32 %v452, %v453
    %490 = vadd.xlane.f32.xlu0 %v489
    %v491 = vpop.xlane.xlu0 %490
    %v492 = vadd.f32 %v454, %v455
    %493 = vadd.xlane.f32.xlu0 %v492
    %v494 = vpop.xlane.xlu0 %493
    %v495 = vadd.f32 %v456, %v457
    %496 = vadd.xlane.f32.xlu0 %v495
    %v497 = vpop.xlane.xlu0 %496
    %v498 = vadd.f32 %v458, %v459
    %499 = vadd.xlane.f32.xlu0 %v498
    %v500 = vpop.xlane.xlu0 %499
    %v501 = vadd.f32 %v460, %v461
    %502 = vadd.xlane.f32.xlu0 %v501
    %v503 = vpop.xlane.xlu0 %502
    %v504 = vadd.f32 %v462, %v463
    %505 = vadd.xlane.f32.xlu0 %v504
    %v506 = vpop.xlane.xlu0 %505
    %v507 = vadd.f32 %v464, %v465
    %508 = vadd.xlane.f32.xlu0 %v507
    %v509 = vpop.xlane.xlu0 %508
    %v510 = vadd.f32 %v466, %v467
    %511 = vadd.xlane.f32.xlu0 %v510
    %v512 = vpop.xlane.xlu0 %511
    %v513 = vadd.f32 %v468, %v469
    %514 = vadd.xlane.f32.xlu0 %v513
    %v515 = vpop.xlane.xlu0 %514
    %v516 = vadd.f32 %v470, %v471
    %517 = vadd.xlane.f32.xlu0 %v516
    %v518 = vpop.xlane.xlu0 %517
    %v519 = vadd.f32 %v472, %v473
    %520 = vadd.xlane.f32.xlu0 %v519
    %v521 = vpop.xlane.xlu0 %520
    %v522 = vadd.f32 %v474, %v475
    %523 = vadd.xlane.f32.xlu0 %v522
    %v524 = vpop.xlane.xlu0 %523
    %v525 = vadd.f32 %v476, %v477
    %526 = vadd.xlane.f32.xlu0 %v525
    %v527 = vpop.xlane.xlu0 %526
    %v528 = vmul.f32 %v446, %v446
    %v529 = vmul.f32 %v447, %v447
    %v530 = vmul.f32 %v448, %v448
    %v531 = vmul.f32 %v449, %v449
    %v532 = vmul.f32 %v450, %v450
    %v533 = vmul.f32 %v451, %v451
    %v534 = vmul.f32 %v452, %v452
    %v535 = vmul.f32 %v453, %v453
    %v536 = vmul.f32 %v454, %v454
    %v537 = vmul.f32 %v455, %v455
    %v538 = vmul.f32 %v456, %v456
    %v539 = vmul.f32 %v457, %v457
    %v540 = vmul.f32 %v458, %v458
    %v541 = vmul.f32 %v459, %v459
    %v542 = vmul.f32 %v460, %v460
    %v543 = vmul.f32 %v461, %v461
    %v544 = vmul.f32 %v462, %v462
    %v545 = vmul.f32 %v463, %v463
    %v546 = vmul.f32 %v464, %v464
    %v547 = vmul.f32 %v465, %v465
    %v548 = vmul.f32 %v466, %v466
    %v549 = vmul.f32 %v467, %v467
    %v550 = vmul.f32 %v468, %v468
    %v551 = vmul.f32 %v469, %v469
    %v552 = vmul.f32 %v470, %v470
    %v553 = vmul.f32 %v471, %v471
    %v554 = vmul.f32 %v472, %v472
    %v555 = vmul.f32 %v473, %v473
    %v556 = vmul.f32 %v474, %v474
    %v557 = vmul.f32 %v475, %v475
    %v558 = vmul.f32 %v476, %v476
    %v559 = vmul.f32 %v477, %v477
    %v560 = vadd.f32 %v528, %v529
    %561 = vadd.xlane.f32.xlu0 %v560
    %v562 = vpop.xlane.xlu0 %561
    %v563 = vadd.f32 %v530, %v531
    %564 = vadd.xlane.f32.xlu0 %v563
    %v565 = vpop.xlane.xlu0 %564
    %v566 = vadd.f32 %v532, %v533
    %567 = vadd.xlane.f32.xlu0 %v566
    %v568 = vpop.xlane.xlu0 %567
    %v569 = vadd.f32 %v534, %v535
    %570 = vadd.xlane.f32.xlu0 %v569
    %v571 = vpop.xlane.xlu0 %570
    %v572 = vadd.f32 %v536, %v537
    %573 = vadd.xlane.f32.xlu0 %v572
    %v574 = vpop.xlane.xlu0 %573
    %v575 = vadd.f32 %v538, %v539
    %576 = vadd.xlane.f32.xlu0 %v575
    %v577 = vpop.xlane.xlu0 %576
    %v578 = vadd.f32 %v540, %v541
    %579 = vadd.xlane.f32.xlu0 %v578
    %v580 = vpop.xlane.xlu0 %579
    %v581 = vadd.f32 %v542, %v543
    %582 = vadd.xlane.f32.xlu0 %v581
    %v583 = vpop.xlane.xlu0 %582
    %v584 = vadd.f32 %v544, %v545
    %585 = vadd.xlane.f32.xlu0 %v584
    %v586 = vpop.xlane.xlu0 %585
    %v587 = vadd.f32 %v546, %v547
    %588 = vadd.xlane.f32.xlu0 %v587
    %v589 = vpop.xlane.xlu0 %588
    %v590 = vadd.f32 %v548, %v549
    %591 = vadd.xlane.f32.xlu0 %v590
    %v592 = vpop.xlane.xlu0 %591
    %v593 = vadd.f32 %v550, %v551
    %594 = vadd.xlane.f32.xlu0 %v593
    %v595 = vpop.xlane.xlu0 %594
    %v596 = vadd.f32 %v552, %v553
    %597 = vadd.xlane.f32.xlu0 %v596
    %v598 = vpop.xlane.xlu0 %597
    %v599 = vadd.f32 %v554, %v555
    %600 = vadd.xlane.f32.xlu0 %v599
    %v601 = vpop.xlane.xlu0 %600
    %v602 = vadd.f32 %v556, %v557
    %603 = vadd.xlane.f32.xlu0 %v602
    %v604 = vpop.xlane.xlu0 %603
    %v605 = vadd.f32 %v558, %v559
    %606 = vadd.xlane.f32.xlu0 %v605
    %v607 = vpop.xlane.xlu0 %606
    %v608 = vmul.f32 %v482, 0.00390625
    %v609 = vmul.f32 %v485, 0.00390625
    %v610 = vmul.f32 %v488, 0.00390625
    %v611 = vmul.f32 %v491, 0.00390625
    %v612 = vmul.f32 %v494, 0.00390625
    %v613 = vmul.f32 %v497, 0.00390625
    %v614 = vmul.f32 %v500, 0.00390625
    %v615 = vmul.f32 %v503, 0.00390625
    %v616 = vmul.f32 %v506, 0.00390625
    %v617 = vmul.f32 %v509, 0.00390625
    %v618 = vmul.f32 %v512, 0.00390625
    %v619 = vmul.f32 %v515, 0.00390625
    %v620 = vmul.f32 %v518, 0.00390625
    %v621 = vmul.f32 %v521, 0.00390625
    %v622 = vmul.f32 %v524, 0.00390625
    %v623 = vmul.f32 %v527, 0.00390625
    %v624 = vmul.f32 %v562, 0.00390625
    %v625 = vmul.f32 %v565, 0.00390625
    %v626 = vmul.f32 %v568, 0.00390625
    %v627 = vmul.f32 %v571, 0.00390625
    %v628 = vmul.f32 %v574, 0.00390625
    %v629 = vmul.f32 %v577, 0.00390625
    %v630 = vmul.f32 %v580, 0.00390625
    %v631 = vmul.f32 %v583, 0.00390625
    %v632 = vmul.f32 %v586, 0.00390625
    %v633 = vmul.f32 %v589, 0.00390625
    %v634 = vmul.f32 %v592, 0.00390625
    %v635 = vmul.f32 %v595, 0.00390625
    %v636 = vmul.f32 %v598, 0.00390625
    %v637 = vmul.f32 %v601, 0.00390625
    %v638 = vmul.f32 %v604, 0.00390625
    %v639 = vmul.f32 %v607, 0.00390625
    %v640 = vmul.f32 %v608, %v608
    %v641 = vmul.f32 %v609, %v609
    %v642 = vmul.f32 %v610, %v610
    %v643 = vmul.f32 %v611, %v611
    %v644 = vmul.f32 %v612, %v612
    %v645 = vmul.f32 %v613, %v613
    %v646 = vmul.f32 %v614, %v614
    %v647 = vmul.f32 %v615, %v615
    %v648 = vmul.f32 %v616, %v616
    %v649 = vmul.f32 %v617, %v617
    %v650 = vmul.f32 %v618, %v618
    %v651 = vmul.f32 %v619, %v619
    %v652 = vmul.f32 %v620, %v620
    %v653 = vmul.f32 %v621, %v621
    %v654 = vmul.f32 %v622, %v622
    %v655 = vmul.f32 %v623, %v623
    %v656 = vsub.f32 %v624, %v640
    %v657 = vsub.f32 %v625, %v641
    %v658 = vsub.f32 %v626, %v642
    %v659 = vsub.f32 %v627, %v643
    %v660 = vsub.f32 %v628, %v644
    %v661 = vsub.f32 %v629, %v645
    %v662 = vsub.f32 %v630, %v646
    %v663 = vsub.f32 %v631, %v647
    %v664 = vsub.f32 %v632, %v648
    %v665 = vsub.f32 %v633, %v649
    %v666 = vsub.f32 %v634, %v650
    %v667 = vsub.f32 %v635, %v651
    %v668 = vsub.f32 %v636, %v652
    %v669 = vsub.f32 %v637, %v653
    %v670 = vsub.f32 %v638, %v654
    %v671 = vsub.f32 %v639, %v655
    %v672 = vmax.f32 %v656, 0.0
    %v673 = vmax.f32 %v657, 0.0
    %v674 = vmax.f32 %v658, 0.0
    %v675 = vmax.f32 %v659, 0.0
    %v676 = vmax.f32 %v660, 0.0
    %v677 = vmax.f32 %v661, 0.0
    %v678 = vmax.f32 %v662, 0.0
    %v679 = vmax.f32 %v663, 0.0
    %v680 = vmax.f32 %v664, 0.0
    %v681 = vmax.f32 %v665, 0.0
    %v682 = vmax.f32 %v666, 0.0
    %v683 = vmax.f32 %v667, 0.0
    %v684 = vmax.f32 %v668, 0.0
    %v685 = vmax.f32 %v669, 0.0
    %v686 = vmax.f32 %v670, 0.0
    %v687 = vmax.f32 %v671, 0.0
    %v688 = vsub.f32 %v446, %v608
    %v689 = vsub.f32 %v447, %v608
    %v690 = vsub.f32 %v448, %v609
    %v691 = vsub.f32 %v449, %v609
    %v692 = vsub.f32 %v450, %v610
    %v693 = vsub.f32 %v451, %v610
    %v694 = vsub.f32 %v452, %v611
    %v695 = vsub.f32 %v453, %v611
    %v696 = vsub.f32 %v454, %v612
    %v697 = vsub.f32 %v455, %v612
    %v698 = vsub.f32 %v456, %v613
    %v699 = vsub.f32 %v457, %v613
    %v700 = vsub.f32 %v458, %v614
    %v701 = vsub.f32 %v459, %v614
    %v702 = vsub.f32 %v460, %v615
    %v703 = vsub.f32 %v461, %v615
    %v704 = vsub.f32 %v462, %v616
    %v705 = vsub.f32 %v463, %v616
    %v706 = vsub.f32 %v464, %v617
    %v707 = vsub.f32 %v465, %v617
    %v708 = vsub.f32 %v466, %v618
    %v709 = vsub.f32 %v467, %v618
    %v710 = vsub.f32 %v468, %v619
    %v711 = vsub.f32 %v469, %v619
    %v712 = vsub.f32 %v470, %v620
    %v713 = vsub.f32 %v471, %v620
    %v714 = vsub.f32 %v472, %v621
    %v715 = vsub.f32 %v473, %v621
    %v716 = vsub.f32 %v474, %v622
    %v717 = vsub.f32 %v475, %v622
    %v718 = vsub.f32 %v476, %v623
    %v719 = vsub.f32 %v477, %v623
    %v720 = vadd.f32 %v672, 1e-05
    %v721 = vadd.f32 %v673, 1e-05
    %v722 = vadd.f32 %v674, 1e-05
    %v723 = vadd.f32 %v675, 1e-05
    %v724 = vadd.f32 %v676, 1e-05
    %v725 = vadd.f32 %v677, 1e-05
    %v726 = vadd.f32 %v678, 1e-05
    %v727 = vadd.f32 %v679, 1e-05
    %v728 = vadd.f32 %v680, 1e-05
    %v729 = vadd.f32 %v681, 1e-05
    %v730 = vadd.f32 %v682, 1e-05
    %v731 = vadd.f32 %v683, 1e-05
    %v732 = vadd.f32 %v684, 1e-05
    %v733 = vadd.f32 %v685, 1e-05
    %v734 = vadd.f32 %v686, 1e-05
    %v735 = vadd.f32 %v687, 1e-05
    %v736 = vrsqrt.pop %v720
    %v737 = vrsqrt.pop %v721
    %v738 = vrsqrt.pop %v722
    %v739 = vrsqrt.pop %v723
    %v740 = vrsqrt.pop %v724
    %v741 = vrsqrt.pop %v725
    %v742 = vrsqrt.pop %v726
    %v743 = vrsqrt.pop %v727
    %v744 = vrsqrt.pop %v728
    %v745 = vrsqrt.pop %v729
    %v746 = vrsqrt.pop %v730
    %v747 = vrsqrt.pop %v731
    %v748 = vrsqrt.pop %v732
    %v749 = vrsqrt.pop %v733
    %v750 = vrsqrt.pop %v734
    %v751 = vrsqrt.pop %v735
    %v752 = vmul.f32 %v688, %v736
    %v753 = vmul.f32 %v689, %v736
    %v754 = vmul.f32 %v690, %v737
    %v755 = vmul.f32 %v691, %v737
    %v756 = vmul.f32 %v692, %v738
    %v757 = vmul.f32 %v693, %v738
    %v758 = vmul.f32 %v694, %v739
    %v759 = vmul.f32 %v695, %v739
    %v760 = vmul.f32 %v696, %v740
    %v761 = vmul.f32 %v697, %v740
    %v762 = vmul.f32 %v698, %v741
    %v763 = vmul.f32 %v699, %v741
    %v764 = vmul.f32 %v700, %v742
    %v765 = vmul.f32 %v701, %v742
    %v766 = vmul.f32 %v702, %v743
    %v767 = vmul.f32 %v703, %v743
    %v768 = vmul.f32 %v704, %v744
    %v769 = vmul.f32 %v705, %v744
    %v770 = vmul.f32 %v706, %v745
    %v771 = vmul.f32 %v707, %v745
    %v772 = vmul.f32 %v708, %v746
    %v773 = vmul.f32 %v709, %v746
    %v774 = vmul.f32 %v710, %v747
    %v775 = vmul.f32 %v711, %v747
    %v776 = vmul.f32 %v712, %v748
    %v777 = vmul.f32 %v713, %v748
    %v778 = vmul.f32 %v714, %v749
    %v779 = vmul.f32 %v715, %v749
    %v780 = vmul.f32 %v716, %v750
    %v781 = vmul.f32 %v717, %v750
    %v782 = vmul.f32 %v718, %v751
    %v783 = vmul.f32 %v719, %v751
    %v785 = vlaneseq
    %v786 = vshrl.u32 %v785, 7
    %v787 = vsub.s32 0, %v786
    %v788 = vrot.slane %v478, %v787
    %v789 = vlaneseq
    %v790 = vshrl.u32 %v789, 7
    %v791 = vsub.s32 1, %v790
    %v792 = vrot.slane %v478, %v791
    %v795 = vmul.f32 %v752, %v788
    %v796 = vmul.f32 %v753, %v792
    %v797 = vmul.f32 %v754, %v788
    %v798 = vmul.f32 %v755, %v792
    %v799 = vmul.f32 %v756, %v788
    %v800 = vmul.f32 %v757, %v792
    %v801 = vmul.f32 %v758, %v788
    %v802 = vmul.f32 %v759, %v792
    %v803 = vmul.f32 %v760, %v788
    %v804 = vmul.f32 %v761, %v792
    %v805 = vmul.f32 %v762, %v788
    %v806 = vmul.f32 %v763, %v792
    %v807 = vmul.f32 %v764, %v788
    %v808 = vmul.f32 %v765, %v792
    %v809 = vmul.f32 %v766, %v788
    %v810 = vmul.f32 %v767, %v792
    %v811 = vmul.f32 %v768, %v788
    %v812 = vmul.f32 %v769, %v792
    %v813 = vmul.f32 %v770, %v788
    %v814 = vmul.f32 %v771, %v792
    %v815 = vmul.f32 %v772, %v788
    %v816 = vmul.f32 %v773, %v792
    %v817 = vmul.f32 %v774, %v788
    %v818 = vmul.f32 %v775, %v792
    %v819 = vmul.f32 %v776, %v788
    %v820 = vmul.f32 %v777, %v792
    %v821 = vmul.f32 %v778, %v788
    %v822 = vmul.f32 %v779, %v792
    %v823 = vmul.f32 %v780, %v788
    %v824 = vmul.f32 %v781, %v792
    %v825 = vmul.f32 %v782, %v788
    %v826 = vmul.f32 %v783, %v792
    %v828 = vlaneseq
    %v829 = vshrl.u32 %v828, 7
    %v830 = vsub.s32 0, %v829
    %v831 = vrot.slane %v479, %v830
    %v832 = vlaneseq
    %v833 = vshrl.u32 %v832, 7
    %v834 = vsub.s32 1, %v833
    %v835 = vrot.slane %v479, %v834
    %v838 = vadd.f32 %v795, %v831
    %v839 = vadd.f32 %v796, %v835
    %v840 = vadd.f32 %v797, %v831
    %v841 = vadd.f32 %v798, %v835
    %v842 = vadd.f32 %v799, %v831
    %v843 = vadd.f32 %v800, %v835
    %v844 = vadd.f32 %v801, %v831
    %v845 = vadd.f32 %v802, %v835
    %v846 = vadd.f32 %v803, %v831
    %v847 = vadd.f32 %v804, %v835
    %v848 = vadd.f32 %v805, %v831
    %v849 = vadd.f32 %v806, %v835
    %v850 = vadd.f32 %v807, %v831
    %v851 = vadd.f32 %v808, %v835
    %v852 = vadd.f32 %v809, %v831
    %v853 = vadd.f32 %v810, %v835
    %v854 = vadd.f32 %v811, %v831
    %v855 = vadd.f32 %v812, %v835
    %v856 = vadd.f32 %v813, %v831
    %v857 = vadd.f32 %v814, %v835
    %v858 = vadd.f32 %v815, %v831
    %v859 = vadd.f32 %v816, %v835
    %v860 = vadd.f32 %v817, %v831
    %v861 = vadd.f32 %v818, %v835
    %v862 = vadd.f32 %v819, %v831
    %v863 = vadd.f32 %v820, %v835
    %v864 = vadd.f32 %v821, %v831
    %v865 = vadd.f32 %v822, %v835
    %v866 = vadd.f32 %v823, %v831
    %v867 = vadd.f32 %v824, %v835
    %v868 = vadd.f32 %v825, %v831
    %v869 = vadd.f32 %v826, %v835
    %870 = vst [vmem:[#allocation7] sm:$0xff] %v838
    %871 = vst [vmem:[#allocation7 + $0x8] sm:$0xff] %v839
    %872 = vst [vmem:[#allocation7 + $0x10] sm:$0xff] %v840
    %873 = vst [vmem:[#allocation7 + $0x18] sm:$0xff] %v841
    %874 = vst [vmem:[#allocation7 + $0x20] sm:$0xff] %v842
    %875 = vst [vmem:[#allocation7 + $0x28] sm:$0xff] %v843
    %876 = vst [vmem:[#allocation7 + $0x30] sm:$0xff] %v844
    %877 = vst [vmem:[#allocation7 + $0x38] sm:$0xff] %v845
    %878 = vst [vmem:[#allocation7 + $0x40] sm:$0xff] %v846
    %879 = vst [vmem:[#allocation7 + $0x48] sm:$0xff] %v847
    %880 = vst [vmem:[#allocation7 + $0x50] sm:$0xff] %v848
    %881 = vst [vmem:[#allocation7 + $0x58] sm:$0xff] %v849
    %882 = vst [vmem:[#allocation7 + $0x60] sm:$0xff] %v850
    %883 = vst [vmem:[#allocation7 + $0x68] sm:$0xff] %v851
    %884 = vst [vmem:[#allocation7 + $0x70] sm:$0xff] %v852
    %885 = vst [vmem:[#allocation7 + $0x78] sm:$0xff] %v853
    %886 = vst [vmem:[#allocation7 + $0x80] sm:$0xff] %v854
    %887 = vst [vmem:[#allocation7 + $0x88] sm:$0xff] %v855
    %888 = vst [vmem:[#allocation7 + $0x90] sm:$0xff] %v856
    %889 = vst [vmem:[#allocation7 + $0x98] sm:$0xff] %v857
    %890 = vst [vmem:[#allocation7 + $0xa0] sm:$0xff] %v858
    %891 = vst [vmem:[#allocation7 + $0xa8] sm:$0xff] %v859
    %892 = vst [vmem:[#allocation7 + $0xb0] sm:$0xff] %v860
    %893 = vst [vmem:[#allocation7 + $0xb8] sm:$0xff] %v861
    %894 = vst [vmem:[#allocation7 + $0xc0] sm:$0xff] %v862
    %895 = vst [vmem:[#allocation7 + $0xc8] sm:$0xff] %v863
    %896 = vst [vmem:[#allocation7 + $0xd0] sm:$0xff] %v864
    %897 = vst [vmem:[#allocation7 + $0xd8] sm:$0xff] %v865
    %898 = vst [vmem:[#allocation7 + $0xe0] sm:$0xff] %v866
    %899 = vst [vmem:[#allocation7 + $0xe8] sm:$0xff] %v867
    %900 = vst [vmem:[#allocation7 + $0xf0] sm:$0xff] %v868
    %901 = vst [vmem:[#allocation7 + $0xf8] sm:$0xff] %v869
    // Predicated region
    $region30: #{tpu_custom_call.1} parent=1 // pred_check
      _
    $region31: #{tpu_custom_call.1} parent=1 // pred_check_branch
      %903 = sbr.rel (0) target = $region33
    $region32: #{tpu_custom_call.1} parent=1 // pred_region
      %s905 = ssub.s32 4096, 4096
      %906 = vsyncadd [#allocation4], %s905
      %s907 = sshll.u32 [#allocation7], 4
      %s908 = int_to_ptr.vmem [resolvable:$true] %s907
      %913 = dma.vmem_to_hbm [thread:$0]  %s908, 4096, %s5, [#allocation4], 256, 256, 16
    $region33: #{tpu_custom_call.1} parent=1 // pred_fallthru
      _
    // Predicated region
    $region34: #{tpu_custom_call.1} parent=1 // pred_check
      _
    $region35: #{tpu_custom_call.1} parent=1 // pred_check_branch
      %915 = sbr.rel (0) target = $region37
    $region36: #{tpu_custom_call.1} parent=1 // pred_region
      %916 = dma.done [#allocation4], 4096
    $region37: #{tpu_custom_call.1} parent=1 // pred_fallthru
      _
    %917 = vsyncpa [#allocation3], 1
    %918 = vsyncpa [#allocation6], 1
    %919 = vsyncpa [#allocation4], 1

</llo_original>
